<compile_context>
chip_gen: v6e
topology: v6e:2x2x1
jax: 0.10.0
libtpu: 0.0.40
codegen_flags: <defaults>
</compile_context>

<pallas_src>
import jax
import jax.numpy as jnp
import numpy as np
from jax.experimental import pallas as pl
from jax.experimental.pallas import tpu as pltpu


# ----------------------------------------------------------------------------
# VMEM budgeting
# ----------------------------------------------------------------------------
def _default_vmem_budget_bytes():
    """Per-step double-buffered working-set budget, derived from the chip."""
    try:
        cap = int(pltpu.get_tpu_info().vmem_capacity_bytes)
    except Exception:
        cap = 64 * 1024 * 1024          # conservative (v7x-sized) fallback
    # Leave ~half of physical VMEM as headroom for pipeline internals.
    return int(max(16 * 1024 * 1024, min(cap // 2, 48 * 1024 * 1024)))


def _vmem_limit_bytes(block_bytes_one_copy):
    """Scoped-VMEM request from the actual block sizes: double-buffered inputs
    and output plus headroom, clamped to stay inside every generation's
    physical VMEM (v7x = 64 MiB)."""
    need = 2 * block_bytes_one_copy + 2 * 1024 * 1024
    return int(min(60 * 1024 * 1024, max(need, 16 * 1024 * 1024)))


# ----------------------------------------------------------------------------
# Kernel bodies
# ----------------------------------------------------------------------------
def _make_flat_kernel(col_offsets, n_in):
    """Flattened layout: input i block (tb, C_i*HW) -> output columns
    [col_offsets[i], col_offsets[i+1]) of a (tb, C_total*HW) block."""

    def kernel(factor_ref, *refs):
        x_refs = refs[:n_in]
        o_ref = refs[n_in]
        for i, xr in enumerate(x_refs):
            lo, hi = int(col_offsets[i]), int(col_offsets[i + 1])
            blk = xr[...]                                   # (tb, C_i*HW)
            if i == 0:
                blk = blk * factor_ref[0].astype(blk.dtype)  # fused scale
            o_ref[:, lo:hi] = blk

    return kernel


def _make_chw_kernel(ch_offsets, n_in):
    """Spatially tiled layout: input i block (1, C_i, t_hw) -> output channel
    rows [ch_offsets[i], ch_offsets[i+1]) of a (1, C_total, t_hw) block."""

    def kernel(factor_ref, *refs):
        x_refs = refs[:n_in]
        o_ref = refs[n_in]
        for i, xr in enumerate(x_refs):
            lo, hi = int(ch_offsets[i]), int(ch_offsets[i + 1])
            blk = xr[...]                                   # (1, C_i, t_hw)
            if i == 0:
                blk = blk * factor_ref[0].astype(blk.dtype)  # fused scale
            o_ref[:, lo:hi, :] = blk

    return kernel


# ----------------------------------------------------------------------------
# Wrapper
# ----------------------------------------------------------------------------
def concat_fusion_factor_pallas(xs_nchw, factor, *, budget_bytes=None):
    """xs_nchw: list of (N, C_i, H, W) arrays (same N, H, W).
    factor: shape-(1,) learnable scalar.
    Returns cat([x0*factor, x1, ...], axis=1) with shape (N, sum C_i, H, W)."""
    assert len(xs_nchw) >= 1
    N, _, H, W = xs_nchw[0].shape
    for x in xs_nchw[1:]:
        assert x.ndim == 4 and x.shape[0] == N and x.shape[2] == H and x.shape[3] == W
    HW = H * W
    channel_sizes = [int(x.shape[1]) for x in xs_nchw]
    c_total = int(sum(channel_sizes))
    n_in = len(xs_nchw)

    # Common dtype across inputs (torch.cat-style promotion).
    dtype = jnp.result_type(*[x.dtype for x in xs_nchw])
    xs_nchw = [x.astype(dtype) for x in xs_nchw]
    itemsize = jnp.dtype(dtype).itemsize

    if budget_bytes is None:
        budget_bytes = _default_vmem_budget_bytes()

    factor_arr = jnp.asarray(factor, jnp.float32).reshape(1)

    # Per grid step we move 2*C_total*HW elements per batch row (read + write),
    # each double-buffered by the BlockSpec pipeline -> 4*C_total*HW*itemsize.
    bytes_per_row = 4 * c_total * HW * itemsize
    rows_fit = budget_bytes // max(bytes_per_row, 1)

    if rows_fit >= 1 and (rows_fit >= N or rows_fit >= 8):
        # ---------- Layout B: fully flattened rows (lane-dense writes) -------
        tb = N if rows_fit >= N else int((rows_fit // 8) * 8)
        col_offsets = np.concatenate(
            [[0], np.cumsum([c * HW for c in channel_sizes])]).astype(int)
        xs_call = [x.reshape(N, c * HW) for x, c in zip(xs_nchw, channel_sizes)]
        grid = (pl.cdiv(N, tb),)
        in_specs = [pl.BlockSpec(memory_space=pltpu.MemorySpace.SMEM)]      # factor
        in_specs += [pl.BlockSpec((tb, c * HW), lambda r: (r, 0))
                     for c in channel_sizes]
        out_spec = pl.BlockSpec((tb, c_total * HW), lambda r: (r, 0))
        out_shape = jax.ShapeDtypeStruct((N, c_total * HW), dtype)
        block_bytes = 2 * tb * c_total * HW * itemsize   # inputs + output blocks
        kernel = _make_flat_kernel(col_offsets, n_in)
        dims = ("parallel",)
    else:
        # ---------- Layout A: tile the flattened spatial axis ----------------
        t_hw = budget_bytes // max(4 * c_total * itemsize, 1)
        t_hw = max(128, (t_hw // 128) * 128)     # lane-dense, 128-multiple tile
        t_hw = min(t_hw, HW) if HW >= 128 else HW
        ch_offsets = np.concatenate([[0], np.cumsum(channel_sizes)]).astype(int)
        xs_call = [x.reshape(N, c, HW) for x, c in zip(xs_nchw, channel_sizes)]
        grid = (N, pl.cdiv(HW, t_hw))            # masked tail handled by Pallas
        in_specs = [pl.BlockSpec(memory_space=pltpu.MemorySpace.SMEM)]      # factor
        in_specs += [pl.BlockSpec((1, c, t_hw), lambda n, t: (n, 0, t))
                     for c in channel_sizes]
        out_spec = pl.BlockSpec((1, c_total, t_hw), lambda n, t: (n, 0, t))
        out_shape = jax.ShapeDtypeStruct((N, c_total, HW), dtype)
        block_bytes = 2 * c_total * t_hw * itemsize
        kernel = _make_chw_kernel(ch_offsets, n_in)
        dims = ("parallel", "parallel")

    out = pl.pallas_call(
        kernel,
        out_shape=out_shape,
        grid=grid,
        in_specs=in_specs,
        out_specs=out_spec,
        compiler_params=pltpu.CompilerParams(
            dimension_semantics=dims,
            vmem_limit_bytes=_vmem_limit_bytes(block_bytes),
        ),
    )(factor_arr, *xs_call)
    return out.reshape(N, c_total, H, W)


def concat_fusion_factor_reference(xs_nchw, factor):
    # Pure-JAX reference of the PyTorch forward's return value.
    return jnp.concatenate([xs_nchw[0] * factor[0]] + list(xs_nchw[1:]), axis=1)


# ----------------------------------------------------------------------------
# Demo / self-test
# ----------------------------------------------------------------------------
if __name__ == "__main__":
    # Small deterministic example consistent with the module (NCHW, concat dim=1).
    N, H, W = 2, 16, 16
    C0, C1 = 4, 8

    key = jax.random.PRNGKey(0)
    k0, k1, kf = jax.random.split(key, 3)
    x0 = jax.random.normal(k0, (N, C0, H, W), jnp.float32)
    x1 = jax.random.normal(k1, (N, C1, H, W), jnp.float32)
    factor = jax.random.uniform(kf, (1,), jnp.float32, 0.5, 1.5)

    ref = concat_fusion_factor_reference([x0, x1], factor)

    # Default path: flattened, lane-dense layout (whole rows fit the budget).
    out = concat_fusion_factor_pallas([x0, x1], factor)
    out = jax.block_until_ready(out)
    np.testing.assert_allclose(np.asarray(out), np.asarray(ref),
                               rtol=1e-6, atol=1e-6)

    # Forced small budget: exercises the spatially tiled fallback layout.
    out2 = concat_fusion_factor_pallas([x0, x1], factor, budget_bytes=64 * 1024)
    out2 = jax.block_until_ready(out2)
    np.testing.assert_allclose(np.asarray(out2), np.asarray(ref),
                               rtol=1e-6, atol=1e-6)

    assert out.shape == (N, C0 + C1, H, W)
    print("KERNEL_OK")
</pallas_src>

<mosaic_0001>
module attributes {stable_mosaic.version = 11 : i64} {
  func.func @kernel(%arg0: i32, %arg1: memref<1xf32, #tpu.memory_space<smem>>, %arg2: memref<2x1024xf32, #tpu.memory_space<vmem>>, %arg3: memref<2x2048xf32, #tpu.memory_space<vmem>>, %arg4: memref<2x3072xf32, #tpu.memory_space<vmem>>) attributes {dimension_semantics = [#tpu.dimension_semantics<parallel>], iteration_bounds = array<i64: 1>, scalar_prefetch = 0 : i64, scratch_operands = 0 : i64, tpu.core_type = #tpu.core_type<tc>, window_params = [{transform_indices = @transform_0, window_bounds = array<i64: 1>}, {transform_indices = @transform_1, window_bounds = array<i64: 2, 1024>}, {transform_indices = @transform_2, window_bounds = array<i64: 2, 2048>}, {transform_indices = @transform_3, window_bounds = array<i64: 2, 3072>}]} {
    %c0 = arith.constant 0 : index
    %c0_0 = arith.constant 0 : index
    %0 = vector.load %arg2[%c0, %c0_0] : memref<2x1024xf32, #tpu.memory_space<vmem>>, vector<2x1024xf32>
    %c0_1 = arith.constant 0 : index
    %1 = memref.load %arg1[%c0_1] : memref<1xf32, #tpu.memory_space<smem>>
    %2 = vector.broadcast %1 : f32 to vector<2x1024xf32>
    %3 = arith.mulf %0, %2 : vector<2x1024xf32>
    %c0_2 = arith.constant 0 : index
    %c0_3 = arith.constant 0 : index
    %4 = vector.load %arg4[%c0_2, %c0_3] : memref<2x3072xf32, #tpu.memory_space<vmem>>, vector<2x1024xf32>
    tpu.vector_store %arg4[%c0_2, %c0_3], %3 {strides = array<i32>} : memref<2x3072xf32, #tpu.memory_space<vmem>>, vector<2x1024xf32>,
    %c0_4 = arith.constant 0 : index
    %c0_5 = arith.constant 0 : index
    %5 = vector.load %arg3[%c0_4, %c0_5] : memref<2x2048xf32, #tpu.memory_space<vmem>>, vector<2x2048xf32>
    %c0_6 = arith.constant 0 : index
    %c1024 = arith.constant 1024 : index
    %6 = vector.load %arg4[%c0_6, %c1024] : memref<2x3072xf32, #tpu.memory_space<vmem>>, vector<2x2048xf32>
    tpu.vector_store %arg4[%c0_6, %c1024], %5 {strides = array<i32>} : memref<2x3072xf32, #tpu.memory_space<vmem>>, vector<2x2048xf32>,
    return
  }
  func.func @transform_0(%arg0: i32) -> i32 {
    %c0_i32 = arith.constant 0 : i32
    %c0_i32_0 = arith.constant 0 : i32
    return %c0_i32 : i32
  }
  func.func @transform_1(%arg0: i32) -> (i32, i32) {
    %c0_i32 = arith.constant 0 : i32
    %c0_i32_0 = arith.constant 0 : i32
    return %arg0, %c0_i32 : i32, i32
  }
  func.func @transform_2(%arg0: i32) -> (i32, i32) {
    %c0_i32 = arith.constant 0 : i32
    %c0_i32_0 = arith.constant 0 : i32
    return %arg0, %c0_i32 : i32, i32
  }
  func.func @transform_3(%arg0: i32) -> (i32, i32) {
    %c0_i32 = arith.constant 0 : i32
    %c0_i32_0 = arith.constant 0 : i32
    return %arg0, %c0_i32 : i32, i32
  }
}

</mosaic_0001>

<llo_original>
// kernel: tpu_custom_call.1
$region0: #{tpu_custom_call.1}
  #allocation0 [shape = 'u32[]', space=smem, size = 0x4, offset = 0x4, fixed_abs, tag = 'smem constant byte address 0x4 - core index']
  #allocation1 [shape = 'u32[144,128]{1,0:T(1,128)}', space=vmem, size = 0x12000, scoped, tag = 'internal scratch']
  #allocation2 [shape = 'f32[1]{0:T(128)S(6)}', space=smem, size = 0x200, scoped, tag = 'scoped memory for tpu_custom_call.1']
  %s0 = inlined_call_operand.<no memory space> [shape: f32[1], index: 0, kind: input, shape index: {}]
  %s1 = inlined_call_operand.hbm [shape: f32[2,1024], index: 1, kind: input, shape index: {}]
  %s2 = inlined_call_operand.hbm [shape: f32[2,2048], index: 2, kind: input, shape index: {}]
  %s3 = inlined_call_operand.hbm [shape: f32[2,3072], index: 3, kind: output, shape index: {}]
  %s4 = sld [smem:[#allocation0]]
  $region30: #{tpu_custom_call.1} parent=0
    _
  %s6 = ssub.s32 1, %s4
  %s7 = scalar_select 0, %s6, %s4
  %8 = sst [smem:[#allocation2]] %s0
  $region1: #{tpu_custom_call.1} parent=0
    #allocation3 [shape = 'u8[8192]{0}', space=vmem, size = 0x2000, scoped, tag = 'input window, operand 1, single buffered']
    #allocation4 [shape = 's32[1]{0}', space=sflag, size = 0x4, scoped, tag = 'scoped memory for tpu_custom_call.1']
    #allocation5 [shape = 's32[1]{0}', space=sflag, size = 0x4, scoped, tag = 'scoped memory for tpu_custom_call.1']
    #allocation6 [shape = 'u8[16384]{0}', space=vmem, size = 0x4000, scoped, tag = 'input window, operand 2, single buffered']
    #allocation7 [shape = 's32[1]{0}', space=sflag, size = 0x4, scoped, tag = 'scoped memory for tpu_custom_call.1']
    #allocation8 [shape = 'u8[24576]{0}', space=vmem, size = 0x6000, scoped, tag = 'output window, operand 0, single buffered']
    %9 = vsyncpa [#allocation4], 0
    %10 = vsyncpa [#allocation7], 0
    %11 = vsyncpa [#allocation5], 0
    // Predicated region
    $region2: #{tpu_custom_call.1} parent=1 // pred_check
      _
    $region3: #{tpu_custom_call.1} parent=1 // pred_check_branch
      %13 = sbr.rel (0) target = $region5
    $region4: #{tpu_custom_call.1} parent=1 // pred_region
      _
    $region5: #{tpu_custom_call.1} parent=1 // pred_fallthru
      _
    // Predicated region
    $region6: #{tpu_custom_call.1} parent=1 // pred_check
      _
    $region7: #{tpu_custom_call.1} parent=1 // pred_check_branch
      %15 = sbr.rel (0) target = $region9
    $region8: #{tpu_custom_call.1} parent=1 // pred_region
      %s17 = ssub.s32 256, 256
      %18 = vsyncadd [#allocation4], %s17
      %s20 = sshll.u32 [#allocation3], 4
      %s21 = int_to_ptr.vmem [resolvable:$true] %s20
      %23 = dma.hbm_to_vmem [thread:$0]  %s1, 256, %s21, [#allocation4]
    $region9: #{tpu_custom_call.1} parent=1 // pred_fallthru
      _
    // Predicated region
    $region10: #{tpu_custom_call.1} parent=1 // pred_check
      _
    $region11: #{tpu_custom_call.1} parent=1 // pred_check_branch
      %25 = sbr.rel (0) target = $region13
    $region12: #{tpu_custom_call.1} parent=1 // pred_region
      %s27 = ssub.s32 512, 512
      %28 = vsyncadd [#allocation7], %s27
      %s30 = sshll.u32 [#allocation6], 4
      %s31 = int_to_ptr.vmem [resolvable:$true] %s30
      %33 = dma.hbm_to_vmem [thread:$0]  %s2, 512, %s31, [#allocation7]
    $region13: #{tpu_custom_call.1} parent=1 // pred_fallthru
      _
    // Predicated region
    $region14: #{tpu_custom_call.1} parent=1 // pred_check
      _
    $region15: #{tpu_custom_call.1} parent=1 // pred_check_branch
      %35 = sbr.rel (0) target = $region17
    $region16: #{tpu_custom_call.1} parent=1 // pred_region
      %36 = dma.done [#allocation4], 256
    $region17: #{tpu_custom_call.1} parent=1 // pred_fallthru
      _
    // Predicated region
    $region18: #{tpu_custom_call.1} parent=1 // pred_check
      _
    $region19: #{tpu_custom_call.1} parent=1 // pred_check_branch
      %38 = sbr.rel (0) target = $region21
    $region20: #{tpu_custom_call.1} parent=1 // pred_region
      %39 = dma.done [#allocation7], 512
    $region21: #{tpu_custom_call.1} parent=1 // pred_fallthru
      _
    %v40 = vld [vmem:[#allocation3] sm:$0xff]
    %v41 = vld [vmem:[#allocation3 + $0x8] sm:$0xff]
    %s42 = sld [smem:[#allocation2]]
    %v43 = vstv %s42
    %v44 = vmul.f32 %v40, %v43
    %v45 = vmul.f32 %v41, %v43
    %46 = vst [vmem:[#allocation8] sm:$0xff] %v44
    %47 = vst [vmem:[#allocation8 + $0x8] sm:$0xff] %v45
    %v48 = vld [vmem:[#allocation6] sm:$0xff]
    %v49 = vld [vmem:[#allocation6 + $0x8] sm:$0xff]
    %v50 = vld [vmem:[#allocation6 + $0x10] sm:$0xff]
    %v51 = vld [vmem:[#allocation6 + $0x18] sm:$0xff]
    %52 = vst [vmem:[#allocation8 + $0x10] sm:$0xff] %v48
    %53 = vst [vmem:[#allocation8 + $0x18] sm:$0xff] %v49
    %54 = vst [vmem:[#allocation8 + $0x20] sm:$0xff] %v50
    %55 = vst [vmem:[#allocation8 + $0x28] sm:$0xff] %v51
    // Predicated region
    $region22: #{tpu_custom_call.1} parent=1 // pred_check
      _
    $region23: #{tpu_custom_call.1} parent=1 // pred_check_branch
      %57 = sbr.rel (0) target = $region25
    $region24: #{tpu_custom_call.1} parent=1 // pred_region
      %s59 = ssub.s32 768, 768
      %60 = vsyncadd [#allocation5], %s59
      %s62 = sshll.u32 [#allocation8], 4
      %s63 = int_to_ptr.vmem [resolvable:$true] %s62
      %65 = dma.vmem_to_hbm [thread:$0]  %s63, 768, %s3, [#allocation5]
    $region25: #{tpu_custom_call.1} parent=1 // pred_fallthru
      _
    // Predicated region
    $region26: #{tpu_custom_call.1} parent=1 // pred_check
      _
    $region27: #{tpu_custom_call.1} parent=1 // pred_check_branch
      %67 = sbr.rel (0) target = $region29
    $region28: #{tpu_custom_call.1} parent=1 // pred_region
      %68 = dma.done [#allocation5], 768
    $region29: #{tpu_custom_call.1} parent=1 // pred_fallthru
      _
    %69 = vsyncpa [#allocation4], 1
    %70 = vsyncpa [#allocation7], 1
    %71 = vsyncpa [#allocation5], 1

</llo_original>
